<compile_context>
chip_gen: v7x
topology: tpu7x:2x2x1
jax: 0.10.0
libtpu: 0.0.40
codegen_flags: <defaults>
</compile_context>

<pallas_src>
import jax
import jax.numpy as jnp
import numpy as np
from jax.experimental import pallas as pl
from jax.experimental.pallas import tpu as pltpu

NUM_PARAMS = 10
DIM = 10
LANE = 128


# ---------------------------------------------------------------------------
# One-time setup: fold the call-invariant 10-step weight chain into M so that
# forward(x) == M @ x.  Plain jnp -- runs once at parameter-build time.
# NOTE: exact for the module's all-ones parameters; for arbitrary trained
# weights this reassociates f32 arithmetic and must be re-run on any update.
# ---------------------------------------------------------------------------
def fold_weights(w_stacked):
    """(10, 10, 10) f32 stacked params -> (10, 10) f32 folded forward matrix."""
    m = w_stacked[0] + w_stacked[0]                      # i = 0: W[0] + W[0]
    for i in range(1, NUM_PARAMS):
        m = jnp.dot(w_stacked[i // 2] + w_stacked[i], m,
                    preferred_element_type=jnp.float32)
    return m


# ---------------------------------------------------------------------------
# Hot forward kernel: one MXU matmul (whole array or one lane-dense tile).
# ---------------------------------------------------------------------------
def forward_kernel(m_ref, x_ref, o_ref):
    """m_ref: (10, 10), x_ref: (10, TN), o_ref: (10, TN)."""
    o_ref[...] = jnp.dot(m_ref[...], x_ref[...],
                         preferred_element_type=jnp.float32)


def parameter_module_forward(m_folded, x, *, col_tile=16384):
    """m_folded: (10, 10) f32, x: (10, N) f32 -> (10, N) f32."""
    dim, n = x.shape

    cost = pl.CostEstimate(flops=2 * dim * dim * n,
                           transcendentals=0,
                           bytes_accessed=4 * (dim * dim + 2 * dim * n))

    # ---- Fast path (no grid): full-array blocks, no padding, no slicing. ----
    # block_shape == full array dims satisfies the (8,128) rule; VMEM cost at
    # the n == col_tile worst case is ~0.7 MiB per operand.
    if n <= col_tile:
        return pl.pallas_call(
            forward_kernel,
            out_shape=jax.ShapeDtypeStruct((dim, n), jnp.float32),
            in_specs=[
                pl.BlockSpec(memory_space=pltpu.MemorySpace.VMEM),  # folded W
                pl.BlockSpec(memory_space=pltpu.MemorySpace.VMEM),  # x
            ],
            out_specs=pl.BlockSpec(memory_space=pltpu.MemorySpace.VMEM),
            cost_estimate=cost,
        )(m_folded, x)

    # ---- Large-N path: 1-D column grid, big lane-dense tiles. ----
    # pl.cdiv grid: Pallas handles the partial last tile itself (reads of the
    # overhang are ignored by masked writes), so padding waste is < one tile
    # and no extra pad/slice HLOs ever touch HBM.
    tn = col_tile                                   # multiple of 128
    grid = (pl.cdiv(n, tn),)
    return pl.pallas_call(
        forward_kernel,
        out_shape=jax.ShapeDtypeStruct((dim, n), jnp.float32),
        grid=grid,
        in_specs=[
            pl.BlockSpec(memory_space=pltpu.MemorySpace.VMEM),  # W resident, untiled
            pl.BlockSpec((DIM, tn), lambda j: (0, j)),          # lane-dense x tile
        ],
        out_specs=pl.BlockSpec((DIM, tn), lambda j: (0, j)),
        compiler_params=pltpu.CompilerParams(
            dimension_semantics=("parallel",)),     # shards columns across TCs (v7x)
        cost_estimate=cost,
    )(m_folded, x)


# ---------------------------------------------------------------------------
# Pure-JAX reference matching the PyTorch loop exactly.
# ---------------------------------------------------------------------------
def reference_forward(w_stacked, x):
    for i in range(NUM_PARAMS):
        x = w_stacked[i // 2] @ x + w_stacked[i] @ x
    return x


if __name__ == "__main__":
    key = jax.random.PRNGKey(0)

    # Parameters: module __init__ uses torch.ones(10, 10) for every param.
    w_stacked = jnp.ones((NUM_PARAMS, DIM, DIM), dtype=jnp.float32)

    # otherparam = nn.Parameter(torch.Tensor(5)) is unused in forward();
    # carried only as a placeholder for parity with the module state.
    otherparam = jnp.zeros((5,), dtype=jnp.float32)

    # One-time weight fold (call-invariant parameters).
    m_folded = fold_weights(w_stacked)

    # ---- Small-N hot path (un-gridded fast path), N = 8. ----
    x_small = jax.random.normal(key, (DIM, 8), dtype=jnp.float32)
    out_small = jax.block_until_ready(parameter_module_forward(m_folded, x_small))
    np.testing.assert_allclose(np.asarray(out_small),
                               np.asarray(reference_forward(w_stacked, x_small)),
                               rtol=1e-4, atol=1e-4)

    # ---- Exercise the gridded path (partial last tile) with a tiny tile. ----
    x_grid = jax.random.normal(jax.random.PRNGKey(1), (DIM, 300), dtype=jnp.float32)
    out_grid = jax.block_until_ready(
        parameter_module_forward(m_folded, x_grid, col_tile=LANE))
    np.testing.assert_allclose(np.asarray(out_grid),
                               np.asarray(reference_forward(w_stacked, x_grid)),
                               rtol=1e-4, atol=1e-4)

    print("KERNEL_OK")
</pallas_src>

<mosaic_0001>
module attributes {stable_mosaic.version = 11 : i64} {
  func.func @forward_kernel(%arg0: memref<10x10xf32, #tpu.memory_space<vmem>>, %arg1: memref<10x8xf32, #tpu.memory_space<vmem>>, %arg2: memref<10x8xf32, #tpu.memory_space<vmem>>) attributes {dimension_semantics = [], scalar_prefetch = 0 : i64, scratch_operands = 0 : i64, tpu.core_type = #tpu.core_type<tc>} {
    %c0 = arith.constant 0 : index
    %c0_0 = arith.constant 0 : index
    %0 = vector.load %arg0[%c0, %c0_0] : memref<10x10xf32, #tpu.memory_space<vmem>>, vector<10x10xf32>
    %c0_1 = arith.constant 0 : index
    %c0_2 = arith.constant 0 : index
    %1 = vector.load %arg1[%c0_1, %c0_2] : memref<10x8xf32, #tpu.memory_space<vmem>>, vector<10x8xf32>
    %cst = arith.constant dense<0.000000e+00> : vector<10x8xf32>
    %2 = tpu.matmul %0, %1, %cst {dimension_numbers = #tpu.dot_dimension_numbers<[1], [0], [0], [1], [0, 0, 1, 1], [], []>} : vector<10x10xf32>, vector<10x8xf32>, vector<10x8xf32> -> vector<10x8xf32>
    %c0_3 = arith.constant 0 : index
    %c0_4 = arith.constant 0 : index
    %3 = vector.load %arg2[%c0_3, %c0_4] : memref<10x8xf32, #tpu.memory_space<vmem>>, vector<10x8xf32>
    tpu.vector_store %arg2[%c0_3, %c0_4], %2 {strides = array<i32>} : memref<10x8xf32, #tpu.memory_space<vmem>>, vector<10x8xf32>,
    return
  }
}

</mosaic_0001>

<llo_original>
// kernel: tpu_custom_call.1
$region0: #{tpu_custom_call.1}
  #allocation0 [shape = 'u32[]', space=smem, size = 0x4, offset = 0x4, fixed_abs, tag = 'smem constant byte address 0x4 - core index']
  #allocation1 [shape = 'u32[144,128]{1,0:T(1,128)}', space=vmem, size = 0x12000, scoped, tag = 'internal scratch']
  %s0 = inlined_call_operand.vmem [shape: f32[10,10], index: 0, kind: input, shape index: {}]
  %s1 = inlined_call_operand.vmem [shape: f32[10,8], index: 1, kind: input, shape index: {}]
  %s2 = inlined_call_operand.vmem [shape: f32[10,8], index: 2, kind: output, shape index: {}]
  %s3 = sld [smem:[#allocation0]]
  $region18: #{tpu_custom_call.1} parent=0
    _
  %s5 = ssub.s32 1, %s3
  %s6 = scalar_select 0, %s5, %s3
  // Predicated region
  $region2: #{tpu_custom_call.1} parent=0 // pred_check
    _
  $region3: #{tpu_custom_call.1} parent=0 // pred_check_branch
    %8 = sbr.rel (0) target = $region5
  $region4: #{tpu_custom_call.1} parent=0 // pred_region
    _
  $region5: #{tpu_custom_call.1} parent=0 // pred_fallthru
    _
  // Predicated region
  $region6: #{tpu_custom_call.1} parent=0 // pred_check
    _
  $region7: #{tpu_custom_call.1} parent=0 // pred_check_branch
    %10 = sbr.rel (0) target = $region9
  $region8: #{tpu_custom_call.1} parent=0 // pred_region
    _
  $region9: #{tpu_custom_call.1} parent=0 // pred_fallthru
    _
  %v11 = vld [vmem:[%s0] sm:$0xff]
  %v12 = vld [vmem:[%s0 + $0x8] sm:$0x3]
  %v13 = vld [vmem:[%s1] sm:$0xff]
  %v14 = vld [vmem:[%s1 + $0x8] sm:$0x3]
  %vm15 = vcmask 80896
  %v17 = vsel %vm15, %v11, 0
  %v20 = vsel %vm15, %v12, 0
  %vm22 = vcmask 1041408
  %v24 = vsel %vm22, %v14, 0
  %26 = vmatprep.subr.mxu0 0.0
  %27 = vmatpush1.msra.mxu0 %v13
  %28 = vmatprep.subr.mxu0 0.0
  %29 = vmatpush1.msra.mxu0 %v24
  %30 = vmatprep.subr.mxu0 0.0
  %31 = vmatpush1.msra.mxu0 0.0
  %32 = vmatprep.subr.mxu0 0.0
  %33 = vmatpush1.msra.mxu0 0.0
  %34 = vmatprep.subr.mxu0 0.0
  %35 = vmatpush1.msra.mxu0 0.0
  %36 = vmatprep.subr.mxu0 0.0
  %37 = vmatpush1.msra.mxu0 0.0
  %38 = vmatprep.subr.mxu0 0.0
  %39 = vmatpush1.msra.mxu0 0.0
  %40 = vmatprep.subr.mxu0 0.0
  %41 = vmatpush1.msra.mxu0 0.0
  %42 = vmatprep.subr.mxu0 0.0
  %43 = vmatpush1.msra.mxu0 0.0
  %44 = vmatprep.subr.mxu0 0.0
  %45 = vmatpush1.msra.mxu0 0.0
  %46 = vmatprep.subr.mxu0 0.0
  %47 = vmatpush1.msra.mxu0 0.0
  %48 = vmatprep.subr.mxu0 0.0
  %49 = vmatpush1.msra.mxu0 0.0
  %50 = vmatprep.subr.mxu0 0.0
  %51 = vmatpush1.msra.mxu0 0.0
  %52 = vmatprep.subr.mxu0 0.0
  %53 = vmatpush1.msra.mxu0 0.0
  %54 = vmatprep.subr.mxu0 0.0
  %55 = vmatpush1.msra.mxu0 0.0
  %56 = vmatprep.subr.mxu0 0.0
  %57 = vmatpush1.msra.mxu0 0.0
  %58 = vmatprep.subr.mxu0 0.0
  %59 = vmatpush1.msra.mxu0 0.0
  %60 = vmatprep.subr.mxu0 0.0
  %61 = vmatpush1.msra.mxu0 0.0
  %62 = vmatprep.subr.mxu0 0.0
  %63 = vmatpush1.msra.mxu0 0.0
  %64 = vmatprep.subr.mxu0 0.0
  %65 = vmatpush1.msra.mxu0 0.0
  %66 = vmatprep.subr.mxu0 0.0
  %67 = vmatpush1.msra.mxu0 0.0
  %68 = vmatprep.subr.mxu0 0.0
  %69 = vmatpush1.msra.mxu0 0.0
  %70 = vmatprep.subr.mxu0 0.0
  %71 = vmatpush1.msra.mxu0 0.0
  %72 = vmatprep.subr.mxu0 0.0
  %73 = vmatpush1.msra.mxu0 0.0
  %74 = vmatprep.subr.mxu0 0.0
  %75 = vmatpush1.msra.mxu0 0.0
  %76 = vmatprep.subr.mxu0 0.0
  %77 = vmatpush1.msra.mxu0 0.0
  %78 = vmatprep.subr.mxu0 0.0
  %79 = vmatpush1.msra.mxu0 0.0
  %80 = vmatprep.subr.mxu0 0.0
  %81 = vmatpush1.msra.mxu0 0.0
  %82 = vmatprep.subr.mxu0 0.0
  %83 = vmatpush1.msra.mxu0 0.0
  %84 = vmatprep.subr.mxu0 0.0
  %85 = vmatpush1.msra.mxu0 0.0
  %86 = vmatprep.subr.mxu0 0.0
  %87 = vmatpush1.msra.mxu0 0.0
  %88 = vmatprep.subr.mxu0 0.0
  %89 = vmatpush1.msra.mxu0 0.0
  %90 = vmatprep.mubr.f32.mxu0 0.0
  %91 = vmatmul.mubr.f32.gmra.mrb[0].mxu0 %v17
  %v92 = vpop.f32.mrb[0].mxu0
  %v93 = vadd.f32 0.0, %v92
  %v94 = vpop.f32.mrb[0].mxu0
  %95 = vmatprep.mubr.f32.mxu0 0.0
  %96 = vmatmul.mubr.f32.gmra.mrb[0].mxu0 %v20
  %v97 = vpop.f32.mrb[0].mxu0
  %v98 = vadd.f32 0.0, %v97
  %v99 = vpop.f32.mrb[0].mxu0
  %100 = vdwg.mxu0
  %vm101 = vcmask 64512
  %102 = vst.msk [vmem:[%s2] sm:$0xff] %vm101, %v93
  %vm103 = vcmask 58368
  %104 = vst.msk [vmem:[%s2 + $0x8] sm:$0x3] %vm103, %v98
  // Predicated region
  $region10: #{tpu_custom_call.1} parent=0 // pred_check
    _
  $region11: #{tpu_custom_call.1} parent=0 // pred_check_branch
    %106 = sbr.rel (0) target = $region13
  $region12: #{tpu_custom_call.1} parent=0 // pred_region
    _
  $region13: #{tpu_custom_call.1} parent=0 // pred_fallthru
    _
  // Predicated region
  $region14: #{tpu_custom_call.1} parent=0 // pred_check
    _
  $region15: #{tpu_custom_call.1} parent=0 // pred_check_branch
    %108 = sbr.rel (0) target = $region17
  $region16: #{tpu_custom_call.1} parent=0 // pred_region
    _
  $region17: #{tpu_custom_call.1} parent=0 // pred_fallthru
    _

</llo_original>
